<compile_context>
chip_gen: v7x
topology: tpu7x:2x2x1
jax: 0.10.0
libtpu: 0.0.40
codegen_flags: <defaults>
</compile_context>

<pallas_src>
import jax
import jax.numpy as jnp
from jax.experimental import pallas as pl
from jax.experimental.pallas import tpu as pltpu

_LANES = 128


def _diag_mul_kernel(diag_ref, x_ref, out_ref):
    # diag_ref: (1, width) row, broadcast across the (tile_rows, width) tile.
    out_ref[...] = x_ref[...] * diag_ref[...]


def _round_up(a: int, b: int) -> int:
    return ((a + b - 1) // b) * b


def diagonal_operator(embeddings: jax.Array, diagonal: jax.Array,
                      tile_rows: int = 1024) -> jax.Array:
    """out[..., d] = diagonal[d] * embeddings[..., d]"""
    dim = diagonal.shape[0]
    assert embeddings.shape[-1] == dim, "last dim must equal operator dim"

    orig_shape = embeddings.shape
    dtype = embeddings.dtype
    n_rows = embeddings.size // dim            # total feature rows
    diag = diagonal.astype(dtype)              # keep multiply in native dtype

    # --- lane packing: make the last (lane) axis a multiple of 128 when we can.
    if dim < _LANES and _LANES % dim == 0 and n_rows % (_LANES // dim) == 0:
        k = _LANES // dim                      # feature rows packed per lane row
    else:
        k = 1
    width = k * dim
    packed_rows = n_rows // k

    x2d = embeddings.reshape(packed_rows, width)
    if k > 1:
        diag_row = jnp.tile(diag, (k,)).reshape(1, width)
    else:
        diag_row = diag.reshape(1, width)

    # --- tile sizing: multiple of the packed-sublane count, no bigger than the
    #     (rounded-up) row count, no padding of the data itself.
    itemsize = jnp.dtype(dtype).itemsize
    sublane = max(8, 32 // itemsize)           # 8 for f32, 16 for bf16, 32 for int8
    tile_rows = max(sublane, (tile_rows // sublane) * sublane)
    tile_rows = min(tile_rows, _round_up(packed_rows, sublane))

    grid = (pl.cdiv(packed_rows, tile_rows),)

    # --- explicit VMEM budget: in + out double-buffered tiles + diag + slack,
    #     clamped to a range valid on v5e (16 MiB scoped default) .. v7x (64 MiB).
    block_bytes = tile_rows * width * itemsize
    needed = 4 * block_bytes + 2 * width * itemsize + (2 << 20)
    vmem_limit = int(min(64 << 20, max(needed, 16 << 20)))

    out2d = pl.pallas_call(
        _diag_mul_kernel,
        out_shape=jax.ShapeDtypeStruct((packed_rows, width), dtype),
        grid_spec=pltpu.PrefetchScalarGridSpec(
            num_scalar_prefetch=0,
            grid=grid,
            in_specs=[
                # diagonal: same lane-dense row for every grid step (stays resident)
                pl.BlockSpec((1, width), lambda i: (0, 0)),
                # embeddings: one large row tile per grid step
                pl.BlockSpec((tile_rows, width), lambda i: (i, 0)),
            ],
            out_specs=pl.BlockSpec((tile_rows, width), lambda i: (i, 0)),
        ),
        compiler_params=pltpu.CompilerParams(
            dimension_semantics=("parallel",),   # shards rows across TCs on v7x
            vmem_limit_bytes=vmem_limit,
        ),
    )(diag_row, x2d)

    return out2d.reshape(orig_shape)


if __name__ == "__main__":
    key = jax.random.PRNGKey(0)
    dim = 32

    # Deterministic "parameter": nn.Parameter(torch.ones((dim,))) in the module;
    # perturb slightly (deterministically) so the multiply is non-trivial.
    diagonal = jnp.ones((dim,), dtype=jnp.float32) + 0.01 * jnp.arange(
        dim, dtype=jnp.float32
    )

    # Main case: packs to a lane-dense (N*dim/128, 128) slab.
    x = jax.random.normal(key, (2, 8, dim), dtype=jnp.float32)
    out = jax.block_until_ready(diagonal_operator(x, diagonal))
    ref = diagonal * x
    assert out.shape == x.shape and out.dtype == x.dtype
    assert jnp.allclose(out, ref, rtol=1e-6, atol=1e-6)

    # Fallback case: row count not divisible by the pack factor (k=4).
    x2 = jax.random.normal(jax.random.PRNGKey(1), (3, dim), dtype=jnp.float32)
    out2 = jax.block_until_ready(diagonal_operator(x2, diagonal))
    ref2 = diagonal * x2
    assert out2.shape == x2.shape and out2.dtype == x2.dtype
    assert jnp.allclose(out2, ref2, rtol=1e-6, atol=1e-6)

    print("KERNEL_OK")
</pallas_src>

<mosaic_0001>
module attributes {stable_mosaic.version = 11 : i64} {
  func.func @_diag_mul_kernel(%arg0: i32, %arg1: memref<1x128xf32, #tpu.memory_space<vmem>>, %arg2: memref<8x128xf32, #tpu.memory_space<vmem>>, %arg3: memref<8x128xf32, #tpu.memory_space<vmem>>) attributes {dimension_semantics = [#tpu.dimension_semantics<parallel>], iteration_bounds = array<i64: 1>, scalar_prefetch = 0 : i64, scratch_operands = 0 : i64, tpu.core_type = #tpu.core_type<tc>, window_params = [{pipeline_mode = #tpu.pipeline_mode<synchronous>, transform_indices = @transform_0, window_bounds = array<i64: 1, 128>}, {transform_indices = @transform_1, window_bounds = array<i64: 8, 128>}, {transform_indices = @transform_2, window_bounds = array<i64: 8, 128>}]} {
    %c0 = arith.constant 0 : index
    %c0_0 = arith.constant 0 : index
    %0 = vector.load %arg2[%c0, %c0_0] : memref<8x128xf32, #tpu.memory_space<vmem>>, vector<8x128xf32>
    %c0_1 = arith.constant 0 : index
    %c0_2 = arith.constant 0 : index
    %1 = vector.load %arg1[%c0_1, %c0_2] : memref<1x128xf32, #tpu.memory_space<vmem>>, vector<1x128xf32>
    %2 = vector.broadcast %1 : vector<1x128xf32> to vector<8x128xf32>
    %3 = arith.mulf %0, %2 : vector<8x128xf32>
    %c0_3 = arith.constant 0 : index
    %c0_4 = arith.constant 0 : index
    %4 = vector.load %arg3[%c0_3, %c0_4] : memref<8x128xf32, #tpu.memory_space<vmem>>, vector<8x128xf32>
    tpu.vector_store %arg3[%c0_3, %c0_4], %3 {strides = array<i32>} : memref<8x128xf32, #tpu.memory_space<vmem>>, vector<8x128xf32>,
    return
  }
  func.func @transform_0(%arg0: i32) -> (i32, i32) {
    %c0_i32 = arith.constant 0 : i32
    %c0_i32_0 = arith.constant 0 : i32
    %c0_i32_1 = arith.constant 0 : i32
    return %c0_i32, %c0_i32_0 : i32, i32
  }
  func.func @transform_1(%arg0: i32) -> (i32, i32) {
    %c0_i32 = arith.constant 0 : i32
    %c0_i32_0 = arith.constant 0 : i32
    return %arg0, %c0_i32 : i32, i32
  }
  func.func @transform_2(%arg0: i32) -> (i32, i32) {
    %c0_i32 = arith.constant 0 : i32
    %c0_i32_0 = arith.constant 0 : i32
    return %arg0, %c0_i32 : i32, i32
  }
}

</mosaic_0001>

<llo_original>
// kernel: tpu_custom_call.1
$region0: #{tpu_custom_call.1}
  #allocation0 [shape = 'u32[]', space=smem, size = 0x4, offset = 0x4, fixed_abs, tag = 'smem constant byte address 0x4 - core index']
  #allocation1 [shape = 'u32[144,128]{1,0:T(1,128)}', space=vmem, size = 0x12000, scoped, tag = 'internal scratch']
  %s0 = inlined_call_operand.hbm [shape: f32[1,128], index: 0, kind: input, shape index: {}]
  %s1 = inlined_call_operand.hbm [shape: f32[4,128], index: 1, kind: input, shape index: {}]
  %s2 = inlined_call_operand.hbm [shape: f32[4,128], index: 2, kind: output, shape index: {}]
  %s3 = sld [smem:[#allocation0]]
  $region26: #{tpu_custom_call.1} parent=0
    _
  %s5 = ssub.s32 1, %s3
  %s6 = scalar_select 0, %s5, %s3
  $region1: #{tpu_custom_call.1} parent=0
    #allocation2 [shape = 'u8[512]{0}', space=vmem, size = 0x400, scoped, tag = 'input window, operand 0, single buffered']
    #allocation3 [shape = 's32[1]{0}', space=sflag, size = 0x4, scoped, tag = 'scoped memory for tpu_custom_call.1']
    #allocation4 [shape = 's32[1]{0}', space=sflag, size = 0x4, scoped, tag = 'scoped memory for tpu_custom_call.1']
    #allocation5 [shape = 'u8[4096]{0}', space=vmem, size = 0x1000, scoped, tag = 'input window, operand 1, single buffered']
    #allocation6 [shape = 's32[1]{0}', space=sflag, size = 0x4, scoped, tag = 'scoped memory for tpu_custom_call.1']
    #allocation7 [shape = 'u8[4096]{0}', space=vmem, size = 0x1000, scoped, tag = 'output window, operand 0, single buffered']
    %7 = vsyncpa [#allocation3], 0
    %8 = vsyncpa [#allocation6], 0
    %9 = vsyncpa [#allocation4], 0
    // Predicated region
    $region2: #{tpu_custom_call.1} parent=1 // pred_check
      _
    $region3: #{tpu_custom_call.1} parent=1 // pred_check_branch
      %11 = sbr.rel (0) target = $region5
    $region4: #{tpu_custom_call.1} parent=1 // pred_region
      %s13 = ssub.s32 16, 16
      %14 = vsyncadd [#allocation3], %s13
      %s16 = sshll.u32 [#allocation2], 4
      %s17 = int_to_ptr.vmem [resolvable:$true] %s16
      %19 = dma.hbm_to_vmem [thread:$0]  %s0, 16, %s17, [#allocation3]
    $region5: #{tpu_custom_call.1} parent=1 // pred_fallthru
      _
    // Predicated region
    $region6: #{tpu_custom_call.1} parent=1 // pred_check
      _
    $region7: #{tpu_custom_call.1} parent=1 // pred_check_branch
      %21 = sbr.rel (0) target = $region9
    $region8: #{tpu_custom_call.1} parent=1 // pred_region
      %s23 = ssub.s32 128, 64
      %24 = vsyncadd [#allocation6], %s23
      %s25 = sshll.u32 [#allocation5], 4
      %s26 = int_to_ptr.vmem [resolvable:$true] %s25
      %31 = dma.hbm_to_vmem [thread:$0]  %s1, 64, %s26, [#allocation6], 64, 64, 4
    $region9: #{tpu_custom_call.1} parent=1 // pred_fallthru
      _
    // Predicated region
    $region10: #{tpu_custom_call.1} parent=1 // pred_check
      _
    $region11: #{tpu_custom_call.1} parent=1 // pred_check_branch
      %33 = sbr.rel (0) target = $region13
    $region12: #{tpu_custom_call.1} parent=1 // pred_region
      %34 = dma.done [#allocation3], 16
    $region13: #{tpu_custom_call.1} parent=1 // pred_fallthru
      _
    // Predicated region
    $region14: #{tpu_custom_call.1} parent=1 // pred_check
      _
    $region15: #{tpu_custom_call.1} parent=1 // pred_check_branch
      %36 = sbr.rel (0) target = $region17
    $region16: #{tpu_custom_call.1} parent=1 // pred_region
      %37 = dma.done [#allocation6], 128
    $region17: #{tpu_custom_call.1} parent=1 // pred_fallthru
      _
    %v38 = vld [vmem:[#allocation5] sm:$0xff]
    %v39 = vld [vmem:[#allocation2] sm:$0x1]
    %v41 = vlaneseq
    %v42 = vshrl.u32 %v41, 7
    %v43 = vsub.s32 0, %v42
    %v44 = vrot.slane %v39, %v43
    %v46 = vmul.f32 %v38, %v44
    %47 = vst [vmem:[#allocation7] sm:$0xff] %v46
    // Predicated region
    $region18: #{tpu_custom_call.1} parent=1 // pred_check
      _
    $region19: #{tpu_custom_call.1} parent=1 // pred_check_branch
      %49 = sbr.rel (0) target = $region21
    $region20: #{tpu_custom_call.1} parent=1 // pred_region
      %s51 = ssub.s32 128, 64
      %52 = vsyncadd [#allocation4], %s51
      %s53 = sshll.u32 [#allocation7], 4
      %s54 = int_to_ptr.vmem [resolvable:$true] %s53
      %59 = dma.vmem_to_hbm [thread:$0]  %s54, 64, %s2, [#allocation4], 64, 64, 4
    $region21: #{tpu_custom_call.1} parent=1 // pred_fallthru
      _
    // Predicated region
    $region22: #{tpu_custom_call.1} parent=1 // pred_check
      _
    $region23: #{tpu_custom_call.1} parent=1 // pred_check_branch
      %61 = sbr.rel (0) target = $region25
    $region24: #{tpu_custom_call.1} parent=1 // pred_region
      %62 = dma.done [#allocation4], 128
    $region25: #{tpu_custom_call.1} parent=1 // pred_fallthru
      _
    %63 = vsyncpa [#allocation3], 1
    %64 = vsyncpa [#allocation6], 1
    %65 = vsyncpa [#allocation4], 1

</llo_original>
